<compile_context>
chip_gen: v7x
topology: tpu7x:2x2x1
jax: 0.10.0
libtpu: 0.0.40
codegen_flags: <defaults>
</compile_context>

<pallas_src>
import functools

import jax
import jax.numpy as jnp
import numpy as np
from jax.experimental import pallas as pl
from jax.experimental.pallas import tpu as pltpu


def _round_up(n, m):
    return ((n + m - 1) // m) * m


# -----------------------------------------------------------------------------
# Kernel
# -----------------------------------------------------------------------------
def node_rnn_kernel(xh_ref, c_ref, w_ref, w1h_ref, w2_ref, b2_ref, out_ref,
                    *, R, RP, O, OFF_H, OFF_C):
    """Single LSTM step + 2-layer MLP, with nodes on the lane axis.

    xh_ref : [F+R+1, T]       = [x ; h_old ; 1]          (matmul dtype)
    c_ref  : [R, T]           cell state                  (f32)
    w_ref  : [4*RP+H, F+R+1]  fused gate + mlp_x weight (bias folded in last column)
    w1h_ref: [H, R]           MLP weight acting on h_new
    w2_ref : [O, H], b2_ref: [O, 1]
    out_ref: [OFF_C+RP, T]    rows [0:O]=out, [OFF_H:OFF_H+R]=h_new, [OFF_C:OFF_C+R]=c_new
    """
    mm_dtype = w_ref.dtype

    # One fused matmul: LSTM gate pre-activations + MLP x-contribution (+ all biases).
    acts = jnp.dot(w_ref[...], xh_ref[...], preferred_element_type=jnp.float32)

    # --- LSTM cell, single timestep, PyTorch gate order (i, f, g, o); all f32 ---
    i = jax.nn.sigmoid(acts[0 * RP:0 * RP + R])
    f = jax.nn.sigmoid(acts[1 * RP:1 * RP + R])
    g = jnp.tanh(acts[2 * RP:2 * RP + R])
    o = jax.nn.sigmoid(acts[3 * RP:3 * RP + R])
    c_new = f * c_ref[...] + i * g
    h_new = o * jnp.tanh(c_new)

    # --- MLP on cat([x, h_new]): x-part (+ b1) already sits in the tail rows of `acts` ---
    hid = acts[4 * RP:] + jnp.dot(w1h_ref[...], h_new.astype(mm_dtype),
                                  preferred_element_type=jnp.float32)
    hid = jnp.maximum(hid, 0.0)                   # ReLU (Dropout p=0.0 is a no-op in eval)
    out = jnp.dot(w2_ref[...], hid.astype(mm_dtype),
                  preferred_element_type=jnp.float32) + b2_ref[...]

    # Sublane-aligned section stores; the HBM writeback of the whole block is lane-dense.
    out_ref[0:O, :] = out
    out_ref[OFF_H:OFF_H + R, :] = h_new
    out_ref[OFF_C:OFF_C + R, :] = c_new


# -----------------------------------------------------------------------------
# Parameters
# -----------------------------------------------------------------------------
def make_params(key, node_features=5, rnn_size=20, hidden_size=64, out_features=4):
    """Deterministic synthetic parameters, PyTorch-style layouts."""
    ks = jax.random.split(key, 8)

    def u(k, shape, scale):
        return jax.random.uniform(k, shape, jnp.float32, -scale, scale)

    s_r = 1.0 / float(np.sqrt(rnn_size))
    s_1 = 1.0 / float(np.sqrt(node_features + rnn_size))
    s_2 = 1.0 / float(np.sqrt(hidden_size))
    return dict(
        w_ih=u(ks[0], (4 * rnn_size, node_features), s_r),            # LSTM weight_ih_l0
        w_hh=u(ks[1], (4 * rnn_size, rnn_size), s_r),                 # LSTM weight_hh_l0
        b_ih=u(ks[2], (4 * rnn_size,), s_r),
        b_hh=u(ks[3], (4 * rnn_size,), s_r),
        w1=u(ks[4], (hidden_size, node_features + rnn_size), s_1),    # mlp[0]
        b1=u(ks[5], (hidden_size,), s_1),
        w2=u(ks[6], (out_features, hidden_size), s_2),                # mlp[3]
        b2=u(ks[7], (out_features,), s_2),
    )


def pack_params(params, node_features, dtype=jnp.float32):
    """One-time packing into the fused, transposed ("nodes on lanes") layout.

    Fused weight rows (each gate padded to RP = round_up(R, 8) rows, so all in-kernel slices
    are sublane-aligned):  [ i | f | g | o | mlp_x ]
    Fused weight columns:  [ x-features (F) | h-features (R) | 1 (bias) ]
    `dtype=jnp.bfloat16` stores the matmul weights in bf16 (v6e/v7x HBM/MXU win); the gate /
    cell-state elementwise math stays in f32 inside the kernel either way.
    """
    F = node_features
    w_ih = jnp.asarray(params["w_ih"], jnp.float32)      # [4R, F]
    w_hh = jnp.asarray(params["w_hh"], jnp.float32)      # [4R, R]
    w1 = jnp.asarray(params["w1"], jnp.float32)          # [H, F+R]
    w2 = jnp.asarray(params["w2"], jnp.float32)          # [O, H]
    b_g = params["b_ih"] + params["b_hh"]                # combined LSTM bias [4R]
    R = w_hh.shape[1]
    H = w1.shape[0]
    O = w2.shape[0]
    RP = _round_up(R, 8)

    # LSTM gate rows: [w_ih | w_hh | bias], padded per gate from R to RP rows (zero rows).
    gate_rows = jnp.concatenate([w_ih, w_hh, b_g[:, None]], axis=1)          # [4R, F+R+1]
    gate_rows = gate_rows.reshape(4, R, F + R + 1)
    gate_rows = jnp.pad(gate_rows, ((0, 0), (0, RP - R), (0, 0)))
    gate_rows = gate_rows.reshape(4 * RP, F + R + 1)

    # MLP x-part rows: only the x columns of w1 (h_old must NOT leak in) + b1.
    mlp_rows = jnp.concatenate(
        [w1[:, :F], jnp.zeros((H, R), jnp.float32), params["b1"][:, None]], axis=1)

    w_fused = jnp.concatenate([gate_rows, mlp_rows], axis=0)                 # [4RP+H, F+R+1]

    return dict(
        w=w_fused.astype(dtype),                                # fused gate + mlp_x weight
        w1h=w1[:, F:].astype(dtype),                            # [H, R]  MLP h_new-part
        w2=w2.astype(dtype),                                    # [O, H]
        b2=jnp.asarray(params["b2"], jnp.float32)[:, None],     # [O, 1]  (stays f32)
        F=F, R=R, RP=RP, H=H, O=O,
    )


# -----------------------------------------------------------------------------
# Forward wrapper (mirrors NodeRNN.forward)
# -----------------------------------------------------------------------------
def node_rnn_forward(packed, x, hidden, *, max_tile_nodes=4096,
                     vmem_limit_bytes=32 * 1024 * 1024):
    """Returns (out, ((h_new, c_new), hidden[1])), matching the PyTorch module."""
    (h0, c0), hidden_edge = hidden            # hidden[0] = LSTM state, hidden[1] = passthrough
    N = x.shape[0]
    h2d, c2d = h0[0], c0[0]                   # num_layers == 1
    F, R, RP, H, O = packed["F"], packed["R"], packed["RP"], packed["H"], packed["O"]
    OFF_H = _round_up(O, 8)                   # sublane start of h_new section
    OFF_C = OFF_H + RP                        # sublane start of c_new section
    OW = OFF_C + RP                           # padded combined-output rows (8-aligned)

    mm_dtype = packed["w"].dtype
    # Feature-major ("nodes on lanes") inputs; the trailing ones row folds all biases into
    # the single fused matmul.  Layout plumbing only — weights were packed once up front.
    xh1 = jnp.concatenate(
        [x.astype(mm_dtype), h2d.astype(mm_dtype), jnp.ones((N, 1), mm_dtype)],
        axis=1).T                                                  # [F+R+1, N]
    c_t = c2d.astype(jnp.float32).T                                # [R, N] (f32)

    # Node-tile size: as large as VMEM comfortably allows; >= 2 grid steps once N > 256 so the
    # "parallel" axis can shard across both v7x TensorCores.  No jnp.pad: the ragged last block
    # is masked by Pallas (garbage lanes only feed dropped output lanes).
    if N > 256:
        tile = min(max_tile_nodes, _round_up(pl.cdiv(N, 2), 128))
    else:
        tile = N
    n_blocks = pl.cdiv(N, tile)

    node_spec = lambda rows: pl.BlockSpec((rows, tile), lambda i: (0, i))
    rep_spec = lambda r, c: pl.BlockSpec((r, c), lambda i: (0, 0))

    kernel = functools.partial(node_rnn_kernel, R=R, RP=RP, O=O, OFF_H=OFF_H, OFF_C=OFF_C)
    combined = pl.pallas_call(
        kernel,
        out_shape=jax.ShapeDtypeStruct((OW, N), jnp.float32),
        grid=(n_blocks,),
        in_specs=[
            node_spec(F + R + 1), node_spec(R),                       # per-node tiles
            rep_spec(4 * RP + H, F + R + 1), rep_spec(H, R),          # replicated weights
            rep_spec(O, H), rep_spec(O, 1),
        ],
        out_specs=node_spec(OW),
        compiler_params=pltpu.CompilerParams(
            dimension_semantics=("parallel",),
            vmem_limit_bytes=vmem_limit_bytes),
    )(xh1, c_t, packed["w"], packed["w1h"], packed["w2"], packed["b2"])

    out = combined[:O, :].T
    h_new = combined[OFF_H:OFF_H + R, :].T
    c_new = combined[OFF_C:OFF_C + R, :].T
    return out, ((h_new[None], c_new[None]), hidden_edge)


# -----------------------------------------------------------------------------
# Pure-JAX reference for correctness checks
# -----------------------------------------------------------------------------
def node_rnn_reference(params, x, hidden):
    (h0, c0), hidden_edge = hidden
    h, c = h0[0], c0[0]
    R = h.shape[1]
    gates = x @ params["w_ih"].T + h @ params["w_hh"].T + params["b_ih"] + params["b_hh"]
    i = jax.nn.sigmoid(gates[:, 0:R])
    f = jax.nn.sigmoid(gates[:, R:2 * R])
    g = jnp.tanh(gates[:, 2 * R:3 * R])
    o = jax.nn.sigmoid(gates[:, 3 * R:4 * R])
    c_new = f * c + i * g
    h_new = o * jnp.tanh(c_new)
    cat = jnp.concatenate([x, h_new], axis=1)
    hid = jnp.maximum(cat @ params["w1"].T + params["b1"], 0.0)
    out = hid @ params["w2"].T + params["b2"]
    return out, ((h_new[None], c_new[None]), hidden_edge)


# -----------------------------------------------------------------------------
# Demo / self-test
# -----------------------------------------------------------------------------
if __name__ == "__main__":
    NODE_FEATURES, RNN_SIZE, HIDDEN_SIZE, OUT_FEATURES = 5, 20, 64, 4

    key = jax.random.PRNGKey(0)
    k_par = jax.random.fold_in(key, 1)
    params = make_params(k_par, NODE_FEATURES, RNN_SIZE, HIDDEN_SIZE, OUT_FEATURES)

    packed_f32 = pack_params(params, NODE_FEATURES)                        # all generations
    packed_bf16 = pack_params(params, NODE_FEATURES, dtype=jnp.bfloat16)   # v6e/v7x option

    def run_and_check(n_nodes, packed, rtol, atol):
        kx, kh, kc, ke = jax.random.split(jax.random.fold_in(key, n_nodes), 4)
        x = jax.random.normal(kx, (n_nodes, NODE_FEATURES), jnp.float32)
        h0 = jax.random.normal(kh, (1, n_nodes, RNN_SIZE), jnp.float32)
        c0 = jax.random.normal(kc, (1, n_nodes, RNN_SIZE), jnp.float32)
        hidden_edge = jax.random.normal(ke, (1, n_nodes, RNN_SIZE), jnp.float32)
        hidden = ((h0, c0), hidden_edge)

        out, ((h_new, c_new), edge_out) = node_rnn_forward(packed, x, hidden)
        jax.block_until_ready((out, h_new, c_new, edge_out))

        ref_out, ((ref_h, ref_c), _) = node_rnn_reference(params, x, hidden)
        np.testing.assert_allclose(np.asarray(out), np.asarray(ref_out), rtol=rtol, atol=atol)
        np.testing.assert_allclose(np.asarray(h_new), np.asarray(ref_h), rtol=rtol, atol=atol)
        np.testing.assert_allclose(np.asarray(c_new), np.asarray(ref_c), rtol=rtol, atol=atol)
        np.testing.assert_array_equal(np.asarray(edge_out), np.asarray(hidden_edge))

    run_and_check(8, packed_f32, 1e-5, 1e-5)     # small single-block case (spec-sized demo)
    run_and_check(300, packed_f32, 1e-5, 1e-5)   # 2-step grid with ragged (masked) last block
    run_and_check(8, packed_bf16, 5e-2, 5e-2)    # bf16 matmul-input path (v6e/v7x HBM saving)

    print("KERNEL_OK")
</pallas_src>

<mosaic_0001>
module attributes {stable_mosaic.version = 11 : i64} {
  func.func @node_rnn_kernel(%arg0: i32, %arg1: memref<26x8xf32, #tpu.memory_space<vmem>>, %arg2: memref<20x8xf32, #tpu.memory_space<vmem>>, %arg3: memref<160x26xf32, #tpu.memory_space<vmem>>, %arg4: memref<64x20xf32, #tpu.memory_space<vmem>>, %arg5: memref<4x64xf32, #tpu.memory_space<vmem>>, %arg6: memref<4x1xf32, #tpu.memory_space<vmem>>, %arg7: memref<56x8xf32, #tpu.memory_space<vmem>>) attributes {dimension_semantics = [#tpu.dimension_semantics<parallel>], iteration_bounds = array<i64: 1>, scalar_prefetch = 0 : i64, scratch_operands = 0 : i64, tpu.core_type = #tpu.core_type<tc>, window_params = [{transform_indices = @transform_0, window_bounds = array<i64: 26, 8>}, {transform_indices = @transform_1, window_bounds = array<i64: 20, 8>}, {pipeline_mode = #tpu.pipeline_mode<synchronous>, transform_indices = @transform_2, window_bounds = array<i64: 160, 26>}, {pipeline_mode = #tpu.pipeline_mode<synchronous>, transform_indices = @transform_3, window_bounds = array<i64: 64, 20>}, {pipeline_mode = #tpu.pipeline_mode<synchronous>, transform_indices = @transform_4, window_bounds = array<i64: 4, 64>}, {pipeline_mode = #tpu.pipeline_mode<synchronous>, transform_indices = @transform_5, window_bounds = array<i64: 4, 1>}, {transform_indices = @transform_6, window_bounds = array<i64: 56, 8>}]} {
    %c0 = arith.constant 0 : index
    %c0_0 = arith.constant 0 : index
    %0 = vector.load %arg3[%c0, %c0_0] : memref<160x26xf32, #tpu.memory_space<vmem>>, vector<160x26xf32>
    %c0_1 = arith.constant 0 : index
    %c0_2 = arith.constant 0 : index
    %1 = vector.load %arg1[%c0_1, %c0_2] : memref<26x8xf32, #tpu.memory_space<vmem>>, vector<26x8xf32>
    %cst = arith.constant dense<0.000000e+00> : vector<160x8xf32>
    %2 = tpu.matmul %0, %1, %cst {dimension_numbers = #tpu.dot_dimension_numbers<[1], [0], [0], [1], [0, 0, 1, 1], [], []>} : vector<160x26xf32>, vector<26x8xf32>, vector<160x8xf32> -> vector<160x8xf32>
    %3 = vector.extract_strided_slice %2 {offsets = [0, 0], sizes = [20, 8], strides = [1, 1]} : vector<160x8xf32> to vector<20x8xf32>
    %4 = arith.negf %3 : vector<20x8xf32>
    %5 = math.exp %4 : vector<20x8xf32>
    %cst_3 = arith.constant 1.000000e+00 : f32
    %6 = vector.broadcast %cst_3 : f32 to vector<20x8xf32>
    %7 = arith.addf %6, %5 : vector<20x8xf32>
    %8 = arith.divf %6, %7 : vector<20x8xf32>
    %9 = vector.extract_strided_slice %2 {offsets = [24, 0], sizes = [20, 8], strides = [1, 1]} : vector<160x8xf32> to vector<20x8xf32>
    %10 = arith.negf %9 : vector<20x8xf32>
    %11 = math.exp %10 : vector<20x8xf32>
    %cst_4 = arith.constant 1.000000e+00 : f32
    %12 = vector.broadcast %cst_4 : f32 to vector<20x8xf32>
    %13 = arith.addf %12, %11 : vector<20x8xf32>
    %14 = arith.divf %12, %13 : vector<20x8xf32>
    %15 = vector.extract_strided_slice %2 {offsets = [48, 0], sizes = [20, 8], strides = [1, 1]} : vector<160x8xf32> to vector<20x8xf32>
    %16 = math.tanh %15 : vector<20x8xf32>
    %17 = vector.extract_strided_slice %2 {offsets = [72, 0], sizes = [20, 8], strides = [1, 1]} : vector<160x8xf32> to vector<20x8xf32>
    %18 = arith.negf %17 : vector<20x8xf32>
    %19 = math.exp %18 : vector<20x8xf32>
    %cst_5 = arith.constant 1.000000e+00 : f32
    %20 = vector.broadcast %cst_5 : f32 to vector<20x8xf32>
    %21 = arith.addf %20, %19 : vector<20x8xf32>
    %22 = arith.divf %20, %21 : vector<20x8xf32>
    %c0_6 = arith.constant 0 : index
    %c0_7 = arith.constant 0 : index
    %23 = vector.load %arg2[%c0_6, %c0_7] : memref<20x8xf32, #tpu.memory_space<vmem>>, vector<20x8xf32>
    %24 = arith.mulf %14, %23 : vector<20x8xf32>
    %25 = arith.mulf %8, %16 : vector<20x8xf32>
    %26 = arith.addf %24, %25 : vector<20x8xf32>
    %27 = math.tanh %26 : vector<20x8xf32>
    %28 = arith.mulf %22, %27 : vector<20x8xf32>
    %29 = vector.extract_strided_slice %2 {offsets = [96, 0], sizes = [64, 8], strides = [1, 1]} : vector<160x8xf32> to vector<64x8xf32>
    %c0_8 = arith.constant 0 : index
    %c0_9 = arith.constant 0 : index
    %30 = vector.load %arg4[%c0_8, %c0_9] : memref<64x20xf32, #tpu.memory_space<vmem>>, vector<64x20xf32>
    %cst_10 = arith.constant dense<0.000000e+00> : vector<64x8xf32>
    %31 = tpu.matmul %30, %28, %cst_10 {dimension_numbers = #tpu.dot_dimension_numbers<[1], [0], [0], [1], [0, 0, 1, 1], [], []>} : vector<64x20xf32>, vector<20x8xf32>, vector<64x8xf32> -> vector<64x8xf32>
    %32 = arith.addf %29, %31 : vector<64x8xf32>
    %cst_11 = arith.constant 0.000000e+00 : f32
    %33 = vector.broadcast %cst_11 : f32 to vector<64x8xf32>
    %34 = arith.maximumf %32, %33 : vector<64x8xf32>
    %c0_12 = arith.constant 0 : index
    %c0_13 = arith.constant 0 : index
    %35 = vector.load %arg5[%c0_12, %c0_13] : memref<4x64xf32, #tpu.memory_space<vmem>>, vector<4x64xf32>
    %cst_14 = arith.constant dense<0.000000e+00> : vector<4x8xf32>
    %36 = tpu.matmul %35, %34, %cst_14 {dimension_numbers = #tpu.dot_dimension_numbers<[1], [0], [0], [1], [0, 0, 1, 1], [], []>} : vector<4x64xf32>, vector<64x8xf32>, vector<4x8xf32> -> vector<4x8xf32>
    %c0_15 = arith.constant 0 : index
    %c0_16 = arith.constant 0 : index
    %37 = vector.load %arg6[%c0_15, %c0_16] : memref<4x1xf32, #tpu.memory_space<vmem>>, vector<4x1xf32>
    %38 = vector.broadcast %37 : vector<4x1xf32> to vector<4x8xf32>
    %39 = arith.addf %36, %38 : vector<4x8xf32>
    %c0_17 = arith.constant 0 : index
    %c0_18 = arith.constant 0 : index
    %40 = vector.load %arg7[%c0_17, %c0_18] : memref<56x8xf32, #tpu.memory_space<vmem>>, vector<4x8xf32>
    tpu.vector_store %arg7[%c0_17, %c0_18], %39 {strides = array<i32>} : memref<56x8xf32, #tpu.memory_space<vmem>>, vector<4x8xf32>,
    %c8 = arith.constant 8 : index
    %c0_19 = arith.constant 0 : index
    %41 = vector.load %arg7[%c8, %c0_19] : memref<56x8xf32, #tpu.memory_space<vmem>>, vector<20x8xf32>
    tpu.vector_store %arg7[%c8, %c0_19], %28 {strides = array<i32>} : memref<56x8xf32, #tpu.memory_space<vmem>>, vector<20x8xf32>,
    %c32 = arith.constant 32 : index
    %c0_20 = arith.constant 0 : index
    %42 = vector.load %arg7[%c32, %c0_20] : memref<56x8xf32, #tpu.memory_space<vmem>>, vector<20x8xf32>
    tpu.vector_store %arg7[%c32, %c0_20], %26 {strides = array<i32>} : memref<56x8xf32, #tpu.memory_space<vmem>>, vector<20x8xf32>,
    return
  }
  func.func @transform_0(%arg0: i32) -> (i32, i32) {
    %c0_i32 = arith.constant 0 : i32
    %c0_i32_0 = arith.constant 0 : i32
    return %c0_i32, %arg0 : i32, i32
  }
  func.func @transform_1(%arg0: i32) -> (i32, i32) {
    %c0_i32 = arith.constant 0 : i32
    %c0_i32_0 = arith.constant 0 : i32
    return %c0_i32, %arg0 : i32, i32
  }
  func.func @transform_2(%arg0: i32) -> (i32, i32) {
    %c0_i32 = arith.constant 0 : i32
    %c0_i32_0 = arith.constant 0 : i32
    %c0_i32_1 = arith.constant 0 : i32
    return %c0_i32, %c0_i32_0 : i32, i32
  }
  func.func @transform_3(%arg0: i32) -> (i32, i32) {
    %c0_i32 = arith.constant 0 : i32
    %c0_i32_0 = arith.constant 0 : i32
    %c0_i32_1 = arith.constant 0 : i32
    return %c0_i32, %c0_i32_0 : i32, i32
  }
  func.func @transform_4(%arg0: i32) -> (i32, i32) {
    %c0_i32 = arith.constant 0 : i32
    %c0_i32_0 = arith.constant 0 : i32
    %c0_i32_1 = arith.constant 0 : i32
    return %c0_i32, %c0_i32_0 : i32, i32
  }
  func.func @transform_5(%arg0: i32) -> (i32, i32) {
    %c0_i32 = arith.constant 0 : i32
    %c0_i32_0 = arith.constant 0 : i32
    %c0_i32_1 = arith.constant 0 : i32
    return %c0_i32, %c0_i32_0 : i32, i32
  }
  func.func @transform_6(%arg0: i32) -> (i32, i32) {
    %c0_i32 = arith.constant 0 : i32
    %c0_i32_0 = arith.constant 0 : i32
    return %c0_i32, %arg0 : i32, i32
  }
}

</mosaic_0001>

<llo_original>
// kernel: tpu_custom_call.1
$region0: #{tpu_custom_call.1}
  #allocation0 [shape = 'u32[]', space=smem, size = 0x4, offset = 0x4, fixed_abs, tag = 'smem constant byte address 0x4 - core index']
  #allocation1 [shape = 'u32[144,128]{1,0:T(1,128)}', space=vmem, size = 0x12000, scoped, tag = 'internal scratch']
  %s0 = inlined_call_operand.vmem [shape: f32[26,8], index: 0, kind: input, shape index: {}]
  %s1 = inlined_call_operand.vmem [shape: f32[20,8], index: 1, kind: input, shape index: {}]
  %s2 = inlined_call_operand.vmem [shape: f32[160,26], index: 2, kind: input, shape index: {}]
  %s3 = inlined_call_operand.vmem [shape: f32[64,20], index: 3, kind: input, shape index: {}]
  %s4 = inlined_call_operand.vmem [shape: f32[4,64], index: 4, kind: input, shape index: {}]
  %s5 = inlined_call_operand.vmem [shape: f32[4,1], index: 5, kind: input, shape index: {}]
  %s6 = inlined_call_operand.vmem [shape: f32[56,8], index: 6, kind: output, shape index: {}]
  %s7 = sld [smem:[#allocation0]]
  $region34: #{tpu_custom_call.1} parent=0
    _
  %s9 = ssub.s32 1, %s7
  %s10 = scalar_select 0, %s9, %s7
  // Predicated region
  $region2: #{tpu_custom_call.1} parent=0 // pred_check
    _
  $region3: #{tpu_custom_call.1} parent=0 // pred_check_branch
    %12 = sbr.rel (0) target = $region5
  $region4: #{tpu_custom_call.1} parent=0 // pred_region
    _
  $region5: #{tpu_custom_call.1} parent=0 // pred_fallthru
    _
  // Predicated region
  $region6: #{tpu_custom_call.1} parent=0 // pred_check
    _
  $region7: #{tpu_custom_call.1} parent=0 // pred_check_branch
    %14 = sbr.rel (0) target = $region9
  $region8: #{tpu_custom_call.1} parent=0 // pred_region
    _
  $region9: #{tpu_custom_call.1} parent=0 // pred_fallthru
    _
  // Predicated region
  $region10: #{tpu_custom_call.1} parent=0 // pred_check
    _
  $region11: #{tpu_custom_call.1} parent=0 // pred_check_branch
    %16 = sbr.rel (0) target = $region13
  $region12: #{tpu_custom_call.1} parent=0 // pred_region
    _
  $region13: #{tpu_custom_call.1} parent=0 // pred_fallthru
    _
  // Predicated region
  $region14: #{tpu_custom_call.1} parent=0 // pred_check
    _
  $region15: #{tpu_custom_call.1} parent=0 // pred_check_branch
    %18 = sbr.rel (0) target = $region17
  $region16: #{tpu_custom_call.1} parent=0 // pred_region
    _
  $region17: #{tpu_custom_call.1} parent=0 // pred_fallthru
    _
  // Predicated region
  $region18: #{tpu_custom_call.1} parent=0 // pred_check
    _
  $region19: #{tpu_custom_call.1} parent=0 // pred_check_branch
    %20 = sbr.rel (0) target = $region21
  $region20: #{tpu_custom_call.1} parent=0 // pred_region
    _
  $region21: #{tpu_custom_call.1} parent=0 // pred_fallthru
    _
  // Predicated region
  $region22: #{tpu_custom_call.1} parent=0 // pred_check
    _
  $region23: #{tpu_custom_call.1} parent=0 // pred_check_branch
    %22 = sbr.rel (0) target = $region25
  $region24: #{tpu_custom_call.1} parent=0 // pred_region
    _
  $region25: #{tpu_custom_call.1} parent=0 // pred_fallthru
    _
  %v23 = vld [vmem:[%s2] sm:$0xff]
  %v24 = vld [vmem:[%s2 + $0x8] sm:$0xff]
  %v25 = vld [vmem:[%s2 + $0x10] sm:$0xff]
  %v26 = vld [vmem:[%s2 + $0x18] sm:$0xff]
  %v27 = vld [vmem:[%s2 + $0x20] sm:$0xff]
  %v28 = vld [vmem:[%s2 + $0x28] sm:$0xff]
  %v29 = vld [vmem:[%s2 + $0x30] sm:$0xff]
  %v30 = vld [vmem:[%s2 + $0x38] sm:$0xff]
  %v31 = vld [vmem:[%s2 + $0x40] sm:$0xff]
  %v32 = vld [vmem:[%s2 + $0x48] sm:$0xff]
  %v33 = vld [vmem:[%s2 + $0x50] sm:$0xff]
  %v34 = vld [vmem:[%s2 + $0x58] sm:$0xff]
  %v35 = vld [vmem:[%s2 + $0x60] sm:$0xff]
  %v36 = vld [vmem:[%s2 + $0x68] sm:$0xff]
  %v37 = vld [vmem:[%s2 + $0x70] sm:$0xff]
  %v38 = vld [vmem:[%s2 + $0x78] sm:$0xff]
  %v39 = vld [vmem:[%s2 + $0x80] sm:$0xff]
  %v40 = vld [vmem:[%s2 + $0x88] sm:$0xff]
  %v41 = vld [vmem:[%s2 + $0x90] sm:$0xff]
  %v42 = vld [vmem:[%s2 + $0x98] sm:$0xff]
  %v43 = vld [vmem:[%s0] sm:$0xff]
  %v44 = vld [vmem:[%s0 + $0x8] sm:$0xff]
  %v45 = vld [vmem:[%s0 + $0x10] sm:$0xff]
  %v46 = vld [vmem:[%s0 + $0x18] sm:$0x3]
  %vm47 = vcmask 211968
  %v49 = vsel %vm47, %v23, 0
  %v52 = vsel %vm47, %v24, 0
  %v55 = vsel %vm47, %v25, 0
  %v58 = vsel %vm47, %v26, 0
  %v61 = vsel %vm47, %v27, 0
  %v64 = vsel %vm47, %v28, 0
  %v67 = vsel %vm47, %v29, 0
  %v70 = vsel %vm47, %v30, 0
  %v73 = vsel %vm47, %v31, 0
  %v76 = vsel %vm47, %v32, 0
  %v79 = vsel %vm47, %v33, 0
  %v82 = vsel %vm47, %v34, 0
  %v85 = vsel %vm47, %v35, 0
  %v88 = vsel %vm47, %v36, 0
  %v91 = vsel %vm47, %v37, 0
  %v94 = vsel %vm47, %v38, 0
  %v97 = vsel %vm47, %v39, 0
  %v100 = vsel %vm47, %v40, 0
  %v103 = vsel %vm47, %v41, 0
  %v106 = vsel %vm47, %v42, 0
  %vm108 = vcmask 1041408
  %v110 = vsel %vm108, %v46, 0
  %112 = vmatprep.subr.mxu0 0.0
  %113 = vmatpush1.msra.mxu0 %v43
  %114 = vmatprep.subr.mxu0 0.0
  %115 = vmatpush1.msra.mxu0 %v44
  %116 = vmatprep.subr.mxu0 0.0
  %117 = vmatpush1.msra.mxu0 %v45
  %118 = vmatprep.subr.mxu0 0.0
  %119 = vmatpush1.msra.mxu0 %v110
  %120 = vmatprep.subr.mxu0 0.0
  %121 = vmatpush1.msra.mxu0 0.0
  %122 = vmatprep.subr.mxu0 0.0
  %123 = vmatpush1.msra.mxu0 0.0
  %124 = vmatprep.subr.mxu0 0.0
  %125 = vmatpush1.msra.mxu0 0.0
  %126 = vmatprep.subr.mxu0 0.0
  %127 = vmatpush1.msra.mxu0 0.0
  %128 = vmatprep.subr.mxu0 0.0
  %129 = vmatpush1.msra.mxu0 0.0
  %130 = vmatprep.subr.mxu0 0.0
  %131 = vmatpush1.msra.mxu0 0.0
  %132 = vmatprep.subr.mxu0 0.0
  %133 = vmatpush1.msra.mxu0 0.0
  %134 = vmatprep.subr.mxu0 0.0
  %135 = vmatpush1.msra.mxu0 0.0
  %136 = vmatprep.subr.mxu0 0.0
  %137 = vmatpush1.msra.mxu0 0.0
  %138 = vmatprep.subr.mxu0 0.0
  %139 = vmatpush1.msra.mxu0 0.0
  %140 = vmatprep.subr.mxu0 0.0
  %141 = vmatpush1.msra.mxu0 0.0
  %142 = vmatprep.subr.mxu0 0.0
  %143 = vmatpush1.msra.mxu0 0.0
  %144 = vmatprep.subr.mxu0 0.0
  %145 = vmatpush1.msra.mxu0 0.0
  %146 = vmatprep.subr.mxu0 0.0
  %147 = vmatpush1.msra.mxu0 0.0
  %148 = vmatprep.subr.mxu0 0.0
  %149 = vmatpush1.msra.mxu0 0.0
  %150 = vmatprep.subr.mxu0 0.0
  %151 = vmatpush1.msra.mxu0 0.0
  %152 = vmatprep.subr.mxu0 0.0
  %153 = vmatpush1.msra.mxu0 0.0
  %154 = vmatprep.subr.mxu0 0.0
  %155 = vmatpush1.msra.mxu0 0.0
  %156 = vmatprep.subr.mxu0 0.0
  %157 = vmatpush1.msra.mxu0 0.0
  %158 = vmatprep.subr.mxu0 0.0
  %159 = vmatpush1.msra.mxu0 0.0
  %160 = vmatprep.subr.mxu0 0.0
  %161 = vmatpush1.msra.mxu0 0.0
  %162 = vmatprep.subr.mxu0 0.0
  %163 = vmatpush1.msra.mxu0 0.0
  %164 = vmatprep.subr.mxu0 0.0
  %165 = vmatpush1.msra.mxu0 0.0
  %166 = vmatprep.subr.mxu0 0.0
  %167 = vmatpush1.msra.mxu0 0.0
  %168 = vmatprep.subr.mxu0 0.0
  %169 = vmatpush1.msra.mxu0 0.0
  %170 = vmatprep.subr.mxu0 0.0
  %171 = vmatpush1.msra.mxu0 0.0
  %172 = vmatprep.subr.mxu0 0.0
  %173 = vmatpush1.msra.mxu0 0.0
  %174 = vmatprep.subr.mxu0 0.0
  %175 = vmatpush1.msra.mxu0 0.0
  %176 = vmatprep.mubr.f32.mxu0 0.0
  %177 = vmatmul.mubr.f32.gmra.mrb[0].mxu0 %v49
  %v178 = vpop.f32.mrb[0].mxu0
  %v179 = vadd.f32 0.0, %v178
  %v180 = vpop.f32.mrb[0].mxu0
  %181 = vmatprep.mubr.f32.mxu0 0.0
  %182 = vmatmul.mubr.f32.gmra.mrb[0].mxu0 %v52
  %v183 = vpop.f32.mrb[0].mxu0
  %v184 = vadd.f32 0.0, %v183
  %v185 = vpop.f32.mrb[0].mxu0
  %186 = vmatprep.mubr.f32.mxu0 0.0
  %187 = vmatmul.mubr.f32.gmra.mrb[0].mxu0 %v55
  %v188 = vpop.f32.mrb[0].mxu0
  %v189 = vadd.f32 0.0, %v188
  %v190 = vpop.f32.mrb[0].mxu0
  %191 = vmatprep.mubr.f32.mxu0 0.0
  %192 = vmatmul.mubr.f32.gmra.mrb[0].mxu0 %v58
  %v193 = vpop.f32.mrb[0].mxu0
  %v194 = vadd.f32 0.0, %v193
  %v195 = vpop.f32.mrb[0].mxu0
  %196 = vmatprep.mubr.f32.mxu0 0.0
  %197 = vmatmul.mubr.f32.gmra.mrb[0].mxu0 %v61
  %v198 = vpop.f32.mrb[0].mxu0
  %v199 = vadd.f32 0.0, %v198
  %v200 = vpop.f32.mrb[0].mxu0
  %201 = vmatprep.mubr.f32.mxu0 0.0
  %202 = vmatmul.mubr.f32.gmra.mrb[0].mxu0 %v64
  %v203 = vpop.f32.mrb[0].mxu0
  %v204 = vadd.f32 0.0, %v203
  %v205 = vpop.f32.mrb[0].mxu0
  %206 = vmatprep.mubr.f32.mxu0 0.0
  %207 = vmatmul.mubr.f32.gmra.mrb[0].mxu0 %v67
  %v208 = vpop.f32.mrb[0].mxu0
  %v209 = vadd.f32 0.0, %v208
  %v210 = vpop.f32.mrb[0].mxu0
  %211 = vmatprep.mubr.f32.mxu0 0.0
  %212 = vmatmul.mubr.f32.gmra.mrb[0].mxu0 %v70
  %v213 = vpop.f32.mrb[0].mxu0
  %v214 = vadd.f32 0.0, %v213
  %v215 = vpop.f32.mrb[0].mxu0
  %216 = vmatprep.mubr.f32.mxu0 0.0
  %217 = vmatmul.mubr.f32.gmra.mrb[0].mxu0 %v73
  %v218 = vpop.f32.mrb[0].mxu0
  %v219 = vadd.f32 0.0, %v218
  %v220 = vpop.f32.mrb[0].mxu0
  %221 = vmatprep.mubr.f32.mxu0 0.0
  %222 = vmatmul.mubr.f32.gmra.mrb[0].mxu0 %v76
  %v223 = vpop.f32.mrb[0].mxu0
  %v224 = vadd.f32 0.0, %v223
  %v225 = vpop.f32.mrb[0].mxu0
  %226 = vmatprep.mubr.f32.mxu0 0.0
  %227 = vmatmul.mubr.f32.gmra.mrb[0].mxu0 %v79
  %v228 = vpop.f32.mrb[0].mxu0
  %v229 = vadd.f32 0.0, %v228
  %v230 = vpop.f32.mrb[0].mxu0
  %231 = vmatprep.mubr.f32.mxu0 0.0
  %232 = vmatmul.mubr.f32.gmra.mrb[0].mxu0 %v82
  %v233 = vpop.f32.mrb[0].mxu0
  %v234 = vadd.f32 0.0, %v233
  %v235 = vpop.f32.mrb[0].mxu0
  %236 = vmatprep.mubr.f32.mxu0 0.0
  %237 = vmatmul.mubr.f32.gmra.mrb[0].mxu0 %v85
  %v238 = vpop.f32.mrb[0].mxu0
  %v239 = vadd.f32 0.0, %v238
  %v240 = vpop.f32.mrb[0].mxu0
  %241 = vmatprep.mubr.f32.mxu0 0.0
  %242 = vmatmul.mubr.f32.gmra.mrb[0].mxu0 %v88
  %v243 = vpop.f32.mrb[0].mxu0
  %v244 = vadd.f32 0.0, %v243
  %v245 = vpop.f32.mrb[0].mxu0
  %246 = vmatprep.mubr.f32.mxu0 0.0
  %247 = vmatmul.mubr.f32.gmra.mrb[0].mxu0 %v91
  %v248 = vpop.f32.mrb[0].mxu0
  %v249 = vadd.f32 0.0, %v248
  %v250 = vpop.f32.mrb[0].mxu0
  %251 = vmatprep.mubr.f32.mxu0 0.0
  %252 = vmatmul.mubr.f32.gmra.mrb[0].mxu0 %v94
  %v253 = vpop.f32.mrb[0].mxu0
  %v254 = vadd.f32 0.0, %v253
  %v255 = vpop.f32.mrb[0].mxu0
  %256 = vmatprep.mubr.f32.mxu0 0.0
  %257 = vmatmul.mubr.f32.gmra.mrb[0].mxu0 %v97
  %v258 = vpop.f32.mrb[0].mxu0
  %v259 = vadd.f32 0.0, %v258
  %v260 = vpop.f32.mrb[0].mxu0
  %261 = vmatprep.mubr.f32.mxu0 0.0
  %262 = vmatmul.mubr.f32.gmra.mrb[0].mxu0 %v100
  %v263 = vpop.f32.mrb[0].mxu0
  %v264 = vadd.f32 0.0, %v263
  %v265 = vpop.f32.mrb[0].mxu0
  %266 = vmatprep.mubr.f32.mxu0 0.0
  %267 = vmatmul.mubr.f32.gmra.mrb[0].mxu0 %v103
  %v268 = vpop.f32.mrb[0].mxu0
  %v269 = vadd.f32 0.0, %v268
  %v270 = vpop.f32.mrb[0].mxu0
  %271 = vmatprep.mubr.f32.mxu0 0.0
  %272 = vmatmul.mubr.f32.gmra.mrb[0].mxu0 %v106
  %v273 = vpop.f32.mrb[0].mxu0
  %v274 = vadd.f32 0.0, %v273
  %v275 = vpop.f32.mrb[0].mxu0
  %276 = vdwg.mxu0
  %v277 = vxor.u32 %v179, 2147483648
  %v278 = vxor.u32 %v184, 2147483648
  %v279 = vxor.u32 %v189, 2147483648
  %v280 = vmul.f32 %v277, 1.442695
  %v281 = vpow.pop %v280
  %v282 = vmul.f32 %v278, 1.442695
  %v283 = vpow.pop %v282
  %v284 = vmul.f32 %v279, 1.442695
  %v285 = vpow.pop %v284
  %v286 = vadd.f32 %v281, 1.0
  %v287 = vadd.f32 %v283, 1.0
  %v288 = vadd.f32 %v285, 1.0
  %v289 = vrcp.pop %v286
  %v290 = vmul.f32 1.0, %v289
  %v291 = vrcp.pop %v287
  %v292 = vmul.f32 1.0, %v291
  %v293 = vrcp.pop %v288
  %v294 = vmul.f32 1.0, %v293
  %v295 = vxor.u32 %v194, 2147483648
  %v296 = vxor.u32 %v199, 2147483648
  %v297 = vxor.u32 %v204, 2147483648
  %v298 = vmul.f32 %v295, 1.442695
  %v299 = vpow.pop %v298
  %v300 = vmul.f32 %v296, 1.442695
  %v301 = vpow.pop %v300
  %v302 = vmul.f32 %v297, 1.442695
  %v303 = vpow.pop %v302
  %v304 = vadd.f32 %v299, 1.0
  %v305 = vadd.f32 %v301, 1.0
  %v306 = vadd.f32 %v303, 1.0
  %v307 = vrcp.pop %v304
  %v308 = vmul.f32 1.0, %v307
  %v309 = vrcp.pop %v305
  %v310 = vmul.f32 1.0, %v309
  %v311 = vrcp.pop %v306
  %v312 = vmul.f32 1.0, %v311
  %v313 = vtanh.pop %v209
  %v314 = vtanh.pop %v214
  %v315 = vtanh.pop %v219
  %v316 = vxor.u32 %v224, 2147483648
  %v317 = vxor.u32 %v229, 2147483648
  %v318 = vxor.u32 %v234, 2147483648
  %v319 = vmul.f32 %v316, 1.442695
  %v320 = vpow.pop %v319
  %v321 = vmul.f32 %v317, 1.442695
  %v322 = vpow.pop %v321
  %v323 = vmul.f32 %v318, 1.442695
  %v324 = vpow.pop %v323
  %v325 = vadd.f32 %v320, 1.0
  %v326 = vadd.f32 %v322, 1.0
  %v327 = vadd.f32 %v324, 1.0
  %v328 = vrcp.pop %v325
  %v329 = vmul.f32 1.0, %v328
  %v330 = vrcp.pop %v326
  %v331 = vmul.f32 1.0, %v330
  %v332 = vrcp.pop %v327
  %v333 = vmul.f32 1.0, %v332
  %v334 = vld [vmem:[%s1] sm:$0xff]
  %v335 = vld [vmem:[%s1 + $0x8] sm:$0xff]
  %v336 = vld [vmem:[%s1 + $0x10] sm:$0xf]
  %v337 = vmul.f32 %v308, %v334
  %v338 = vmul.f32 %v310, %v335
  %v339 = vmul.f32 %v312, %v336
  %v340 = vmul.f32 %v290, %v313
  %v341 = vmul.f32 %v292, %v314
  %v342 = vmul.f32 %v294, %v315
  %v343 = vadd.f32 %v337, %v340
  %v344 = vadd.f32 %v338, %v341
  %v345 = vadd.f32 %v339, %v342
  %v346 = vtanh.pop %v343
  %v347 = vtanh.pop %v344
  %v348 = vtanh.pop %v345
  %v349 = vmul.f32 %v329, %v346
  %v350 = vmul.f32 %v331, %v347
  %v351 = vmul.f32 %v333, %v348
  %v352 = vld [vmem:[%s3] sm:$0xff]
  %v353 = vld [vmem:[%s3 + $0x8] sm:$0xff]
  %v354 = vld [vmem:[%s3 + $0x10] sm:$0xff]
  %v355 = vld [vmem:[%s3 + $0x18] sm:$0xff]
  %v356 = vld [vmem:[%s3 + $0x20] sm:$0xff]
  %v357 = vld [vmem:[%s3 + $0x28] sm:$0xff]
  %v358 = vld [vmem:[%s3 + $0x30] sm:$0xff]
  %v359 = vld [vmem:[%s3 + $0x38] sm:$0xff]
  %vm360 = vcmask 162816
  %v362 = vsel %vm360, %v352, 0
  %v365 = vsel %vm360, %v353, 0
  %v368 = vsel %vm360, %v354, 0
  %v371 = vsel %vm360, %v355, 0
  %v374 = vsel %vm360, %v356, 0
  %v377 = vsel %vm360, %v357, 0
  %v380 = vsel %vm360, %v358, 0
  %v383 = vsel %vm360, %v359, 0
  %vm385 = vcmask 1043456
  %v387 = vsel %vm385, %v351, 0
  %389 = vmatprep.subr.mxu0 0.0
  %390 = vmatpush1.msra.mxu0 %v349
  %391 = vmatprep.subr.mxu0 0.0
  %392 = vmatpush1.msra.mxu0 %v350
  %393 = vmatprep.subr.mxu0 0.0
  %394 = vmatpush1.msra.mxu0 %v387
  %395 = vmatprep.subr.mxu0 0.0
  %396 = vmatpush1.msra.mxu0 0.0
  %397 = vmatprep.subr.mxu0 0.0
  %398 = vmatpush1.msra.mxu0 0.0
  %399 = vmatprep.subr.mxu0 0.0
  %400 = vmatpush1.msra.mxu0 0.0
  %401 = vmatprep.subr.mxu0 0.0
  %402 = vmatpush1.msra.mxu0 0.0
  %403 = vmatprep.subr.mxu0 0.0
  %404 = vmatpush1.msra.mxu0 0.0
  %405 = vmatprep.subr.mxu0 0.0
  %406 = vmatpush1.msra.mxu0 0.0
  %407 = vmatprep.subr.mxu0 0.0
  %408 = vmatpush1.msra.mxu0 0.0
  %409 = vmatprep.subr.mxu0 0.0
  %410 = vmatpush1.msra.mxu0 0.0
  %411 = vmatprep.subr.mxu0 0.0
  %412 = vmatpush1.msra.mxu0 0.0
  %413 = vmatprep.subr.mxu0 0.0
  %414 = vmatpush1.msra.mxu0 0.0
  %415 = vmatprep.subr.mxu0 0.0
  %416 = vmatpush1.msra.mxu0 0.0
  %417 = vmatprep.subr.mxu0 0.0
  %418 = vmatpush1.msra.mxu0 0.0
  %419 = vmatprep.subr.mxu0 0.0
  %420 = vmatpush1.msra.mxu0 0.0
  %421 = vmatprep.subr.mxu0 0.0
  %422 = vmatpush1.msra.mxu0 0.0
  %423 = vmatprep.subr.mxu0 0.0
  %424 = vmatpush1.msra.mxu0 0.0
  %425 = vmatprep.subr.mxu0 0.0
  %426 = vmatpush1.msra.mxu0 0.0
  %427 = vmatprep.subr.mxu0 0.0
  %428 = vmatpush1.msra.mxu0 0.0
  %429 = vmatprep.subr.mxu0 0.0
  %430 = vmatpush1.msra.mxu0 0.0
  %431 = vmatprep.subr.mxu0 0.0
  %432 = vmatpush1.msra.mxu0 0.0
  %433 = vmatprep.subr.mxu0 0.0
  %434 = vmatpush1.msra.mxu0 0.0
  %435 = vmatprep.subr.mxu0 0.0
  %436 = vmatpush1.msra.mxu0 0.0
  %437 = vmatprep.subr.mxu0 0.0
  %438 = vmatpush1.msra.mxu0 0.0
  %439 = vmatprep.subr.mxu0 0.0
  %440 = vmatpush1.msra.mxu0 0.0
  %441 = vmatprep.subr.mxu0 0.0
  %442 = vmatpush1.msra.mxu0 0.0
  %443 = vmatprep.subr.mxu0 0.0
  %444 = vmatpush1.msra.mxu0 0.0
  %445 = vmatprep.subr.mxu0 0.0
  %446 = vmatpush1.msra.mxu0 0.0
  %447 = vmatprep.subr.mxu0 0.0
  %448 = vmatpush1.msra.mxu0 0.0
  %449 = vmatprep.subr.mxu0 0.0
  %450 = vmatpush1.msra.mxu0 0.0
  %451 = vmatprep.subr.mxu0 0.0
  %452 = vmatpush1.msra.mxu0 0.0
  %453 = vmatprep.mubr.f32.mxu0 0.0
  %454 = vmatmul.mubr.f32.gmra.mrb[0].mxu0 %v362
  %v455 = vpop.f32.mrb[0].mxu0
  %v456 = vadd.f32 0.0, %v455
  %v457 = vpop.f32.mrb[0].mxu0
  %458 = vmatprep.mubr.f32.mxu0 0.0
  %459 = vmatmul.mubr.f32.gmra.mrb[0].mxu0 %v365
  %v460 = vpop.f32.mrb[0].mxu0
  %v461 = vadd.f32 0.0, %v460
  %v462 = vpop.f32.mrb[0].mxu0
  %463 = vmatprep.mubr.f32.mxu0 0.0
  %464 = vmatmul.mubr.f32.gmra.mrb[0].mxu0 %v368
  %v465 = vpop.f32.mrb[0].mxu0
  %v466 = vadd.f32 0.0, %v465
  %v467 = vpop.f32.mrb[0].mxu0
  %468 = vmatprep.mubr.f32.mxu0 0.0
  %469 = vmatmul.mubr.f32.gmra.mrb[0].mxu0 %v371
  %v470 = vpop.f32.mrb[0].mxu0
  %v471 = vadd.f32 0.0, %v470
  %v472 = vpop.f32.mrb[0].mxu0
  %473 = vmatprep.mubr.f32.mxu0 0.0
  %474 = vmatmul.mubr.f32.gmra.mrb[0].mxu0 %v374
  %v475 = vpop.f32.mrb[0].mxu0
  %v476 = vadd.f32 0.0, %v475
  %v477 = vpop.f32.mrb[0].mxu0
  %478 = vmatprep.mubr.f32.mxu0 0.0
  %479 = vmatmul.mubr.f32.gmra.mrb[0].mxu0 %v377
  %v480 = vpop.f32.mrb[0].mxu0
  %v481 = vadd.f32 0.0, %v480
  %v482 = vpop.f32.mrb[0].mxu0
  %483 = vmatprep.mubr.f32.mxu0 0.0
  %484 = vmatmul.mubr.f32.gmra.mrb[0].mxu0 %v380
  %v485 = vpop.f32.mrb[0].mxu0
  %v486 = vadd.f32 0.0, %v485
  %v487 = vpop.f32.mrb[0].mxu0
  %488 = vmatprep.mubr.f32.mxu0 0.0
  %489 = vmatmul.mubr.f32.gmra.mrb[0].mxu0 %v383
  %v490 = vpop.f32.mrb[0].mxu0
  %v491 = vadd.f32 0.0, %v490
  %v492 = vpop.f32.mrb[0].mxu0
  %493 = vdwg.mxu0
  %v494 = vadd.f32 %v239, %v456
  %v495 = vadd.f32 %v244, %v461
  %v496 = vadd.f32 %v249, %v466
  %v497 = vadd.f32 %v254, %v471
  %v498 = vadd.f32 %v259, %v476
  %v499 = vadd.f32 %v264, %v481
  %v500 = vadd.f32 %v269, %v486
  %v501 = vadd.f32 %v274, %v491
  %v502 = vmax.f32 %v494, 0.0
  %v503 = vmax.f32 %v495, 0.0
  %v504 = vmax.f32 %v496, 0.0
  %v505 = vmax.f32 %v497, 0.0
  %v506 = vmax.f32 %v498, 0.0
  %v507 = vmax.f32 %v499, 0.0
  %v508 = vmax.f32 %v500, 0.0
  %v509 = vmax.f32 %v501, 0.0
  %v510 = vld [vmem:[%s4] sm:$0xf]
  %v511 = vld [vmem:[%s5] sm:$0xf]
  %513 = vset.pattern.permute.xlu0 0
  %514 = vperm.xlu0 %513, %v511
  %v515 = vpop.permute.xlu0 %514
  %vm517 = vcmask 523264
  %v519 = vsel %vm517, %v510, 0
  %521 = vmatprep.subr.mxu0 0.0
  %522 = vmatpush1.msra.mxu0 %v502
  %523 = vmatprep.subr.mxu0 0.0
  %524 = vmatpush1.msra.mxu0 %v503
  %525 = vmatprep.subr.mxu0 0.0
  %526 = vmatpush1.msra.mxu0 %v504
  %527 = vmatprep.subr.mxu0 0.0
  %528 = vmatpush1.msra.mxu0 %v505
  %529 = vmatprep.subr.mxu0 0.0
  %530 = vmatpush1.msra.mxu0 %v506
  %531 = vmatprep.subr.mxu0 0.0
  %532 = vmatpush1.msra.mxu0 %v507
  %533 = vmatprep.subr.mxu0 0.0
  %534 = vmatpush1.msra.mxu0 %v508
  %535 = vmatprep.subr.mxu0 0.0
  %536 = vmatpush1.msra.mxu0 %v509
  %537 = vmatprep.subr.mxu0 0.0
  %538 = vmatpush1.msra.mxu0 0.0
  %539 = vmatprep.subr.mxu0 0.0
  %540 = vmatpush1.msra.mxu0 0.0
  %541 = vmatprep.subr.mxu0 0.0
  %542 = vmatpush1.msra.mxu0 0.0
  %543 = vmatprep.subr.mxu0 0.0
  %544 = vmatpush1.msra.mxu0 0.0
  %545 = vmatprep.subr.mxu0 0.0
  %546 = vmatpush1.msra.mxu0 0.0
  %547 = vmatprep.subr.mxu0 0.0
  %548 = vmatpush1.msra.mxu0 0.0
  %549 = vmatprep.subr.mxu0 0.0
  %550 = vmatpush1.msra.mxu0 0.0
  %551 = vmatprep.subr.mxu0 0.0
  %552 = vmatpush1.msra.mxu0 0.0
  %553 = vmatprep.subr.mxu0 0.0
  %554 = vmatpush1.msra.mxu0 0.0
  %555 = vmatprep.subr.mxu0 0.0
  %556 = vmatpush1.msra.mxu0 0.0
  %557 = vmatprep.subr.mxu0 0.0
  %558 = vmatpush1.msra.mxu0 0.0
  %559 = vmatprep.subr.mxu0 0.0
  %560 = vmatpush1.msra.mxu0 0.0
  %561 = vmatprep.subr.mxu0 0.0
  %562 = vmatpush1.msra.mxu0 0.0
  %563 = vmatprep.subr.mxu0 0.0
  %564 = vmatpush1.msra.mxu0 0.0
  %565 = vmatprep.subr.mxu0 0.0
  %566 = vmatpush1.msra.mxu0 0.0
  %567 = vmatprep.subr.mxu0 0.0
  %568 = vmatpush1.msra.mxu0 0.0
  %569 = vmatprep.subr.mxu0 0.0
  %570 = vmatpush1.msra.mxu0 0.0
  %571 = vmatprep.subr.mxu0 0.0
  %572 = vmatpush1.msra.mxu0 0.0
  %573 = vmatprep.subr.mxu0 0.0
  %574 = vmatpush1.msra.mxu0 0.0
  %575 = vmatprep.subr.mxu0 0.0
  %576 = vmatpush1.msra.mxu0 0.0
  %577 = vmatprep.subr.mxu0 0.0
  %578 = vmatpush1.msra.mxu0 0.0
  %579 = vmatprep.subr.mxu0 0.0
  %580 = vmatpush1.msra.mxu0 0.0
  %581 = vmatprep.subr.mxu0 0.0
  %582 = vmatpush1.msra.mxu0 0.0
  %583 = vmatprep.subr.mxu0 0.0
  %584 = vmatpush1.msra.mxu0 0.0
  %585 = vmatprep.mubr.f32.mxu0 0.0
  %586 = vmatmul.mubr.f32.gmra.mrb[0].mxu0 %v519
  %v587 = vpop.f32.mrb[0].mxu0
  %v588 = vadd.f32 %v515, %v587
  %v589 = vpop.f32.mrb[0].mxu0
  %590 = vdwg.mxu0
  %vm591 = vcmask 60416
  %592 = vst.msk [vmem:[%s6] sm:$0xf] %vm591, %v588
  %vm593 = vcmask 64512
  %594 = vst.msk [vmem:[%s6 + $0x8] sm:$0xff] %vm593, %v349
  %595 = vst.msk [vmem:[%s6 + $0x10] sm:$0xff] %vm593, %v350
  %596 = vst.msk [vmem:[%s6 + $0x18] sm:$0xf] %vm591, %v351
  %597 = vst.msk [vmem:[%s6 + $0x20] sm:$0xff] %vm593, %v343
  %598 = vst.msk [vmem:[%s6 + $0x28] sm:$0xff] %vm593, %v344
  %599 = vst.msk [vmem:[%s6 + $0x30] sm:$0xf] %vm591, %v345
  // Predicated region
  $region26: #{tpu_custom_call.1} parent=0 // pred_check
    _
  $region27: #{tpu_custom_call.1} parent=0 // pred_check_branch
    %601 = sbr.rel (0) target = $region29
  $region28: #{tpu_custom_call.1} parent=0 // pred_region
    _
  $region29: #{tpu_custom_call.1} parent=0 // pred_fallthru
    _
  // Predicated region
  $region30: #{tpu_custom_call.1} parent=0 // pred_check
    _
  $region31: #{tpu_custom_call.1} parent=0 // pred_check_branch
    %603 = sbr.rel (0) target = $region33
  $region32: #{tpu_custom_call.1} parent=0 // pred_region
    _
  $region33: #{tpu_custom_call.1} parent=0 // pred_fallthru
    _

</llo_original>
